<compile_context>
chip_gen: v7x
topology: tpu7x:2x2x1
jax: 0.10.0
libtpu: 0.0.40
codegen_flags: <defaults>
</compile_context>

<pallas_src>
import functools

import jax
import jax.numpy as jnp
from jax.experimental import pallas as pl
from jax.experimental.pallas import tpu as pltpu


def _capsule_loss_kernel(labels_ref, classes_ref, images_ref, recon_ref,
                         out_ref, acc_ref, *, inv_batch):
    k = pl.program_id(0)
    nk = pl.num_programs(0)

    # Margin loss (tiny, O(B*NC)): compute once, on the first grid step.
    @pl.when(k == 0)
    def _init():
        labels = labels_ref[...].astype(jnp.float32)
        classes = classes_ref[...].astype(jnp.float32)
        left = jnp.maximum(0.9 - classes, 0.0)
        right = jnp.maximum(classes - 0.1, 0.0)
        margin = jnp.sum(labels * (left * left)
                         + 0.5 * (1.0 - labels) * (right * right))
        acc_ref[0] = margin

    # Streaming SSE over this D-tile: upcast to f32 BEFORE squaring so bf16
    # inputs keep full precision in the accumulation.
    diff = recon_ref[...].astype(jnp.float32) - images_ref[...].astype(jnp.float32)
    acc_ref[0] += 0.0005 * jnp.sum(diff * diff)

    @pl.when(k == nk - 1)
    def _finalize():
        out_ref[0, 0] = acc_ref[0] * inv_batch


def _round_up(x, m):
    return ((x + m - 1) // m) * m


def capsule_loss(images, labels, classes, reconstructions):
    """images: (B, C, H, W); labels, classes: (B, NC); reconstructions: (B, D)."""
    assert images.size == reconstructions.size
    B, D = reconstructions.shape
    NC = classes.shape[1]

    # Keep native dtypes for the two big operands (no wrapper-side f32 cast).
    images_flat = images.reshape(B, D)
    recon = reconstructions

    img_isz = jnp.dtype(images_flat.dtype).itemsize
    rec_isz = jnp.dtype(recon.dtype).itemsize
    elem = max(img_isz, rec_isz)

    # ---- lane-dense tiling of the feature axis ----
    d_pad128 = _round_up(D, 128)
    total_bytes = B * d_pad128 * (img_isz + rec_isz)
    if total_bytes <= 8 * 1024 * 1024:
        # Small problem: one block; ~0.35us/step overhead would dominate.
        d_tile = d_pad128
    else:
        # ~2 MiB per input tile -> double-buffered stream fits all generations.
        d_tile = max(128, ((2 * 1024 * 1024) // (B * elem)) // 128 * 128)
        d_tile = min(d_tile, d_pad128)
    d_pad = _round_up(D, d_tile)
    grid_k = d_pad // d_tile

    if d_pad != D:
        # Pad both identically with zeros: padded diffs contribute exactly 0.
        images_flat = jnp.pad(images_flat, ((0, 0), (0, d_pad - D)))
        recon = jnp.pad(recon, ((0, 0), (0, d_pad - D)))

    kernel = functools.partial(_capsule_loss_kernel, inv_batch=1.0 / B)

    cls_isz = jnp.dtype(classes.dtype).itemsize
    cost = pl.CostEstimate(
        flops=3 * B * d_pad + 8 * B * NC,
        transcendentals=0,
        bytes_accessed=B * d_pad * (img_isz + rec_isz) + 2 * B * NC * cls_isz + 4,
    )

    out = pl.pallas_call(
        kernel,
        out_shape=jax.ShapeDtypeStruct((1, 1), jnp.float32),
        grid_spec=pltpu.PrefetchScalarGridSpec(
            num_scalar_prefetch=0,
            grid=(grid_k,),
            in_specs=[
                pl.BlockSpec((B, NC), lambda k: (0, 0)),       # labels  (resident)
                pl.BlockSpec((B, NC), lambda k: (0, 0)),       # classes (resident)
                pl.BlockSpec((B, d_tile), lambda k: (0, k)),   # images  (streamed)
                pl.BlockSpec((B, d_tile), lambda k: (0, k)),   # recon   (streamed)
            ],
            out_specs=pl.BlockSpec(memory_space=pltpu.SMEM),
            scratch_shapes=[pltpu.SMEM((1,), jnp.float32)],
        ),
        compiler_params=pltpu.CompilerParams(
            dimension_semantics=("arbitrary",),
        ),
        cost_estimate=cost,
    )(labels, classes, images_flat, recon)
    return out[0, 0]


def capsule_loss_ref(images, labels, classes, reconstructions):
    """Pure-JAX reference mirroring the PyTorch forward (f32 math)."""
    labels = labels.astype(jnp.float32)
    classes = classes.astype(jnp.float32)
    left = jnp.maximum(0.9 - classes, 0.0) ** 2
    right = jnp.maximum(classes - 0.1, 0.0) ** 2
    margin_loss = jnp.sum(labels * left + 0.5 * (1.0 - labels) * right)
    B = reconstructions.shape[0]
    img = images.reshape(B, -1).astype(jnp.float32)
    rec = reconstructions.astype(jnp.float32)
    recon_loss = jnp.sum((rec - img) ** 2)
    return (margin_loss + 0.0005 * recon_loss) / B


if __name__ == "__main__":
    key = jax.random.PRNGKey(0)
    k1, k2, k3, k4 = jax.random.split(key, 4)

    B, C, H, W = 2, 4, 16, 16
    NUM_CLASSES = 10
    D = C * H * W

    images = jax.random.uniform(k1, (B, C, H, W), dtype=jnp.float32)
    label_idx = jax.random.randint(k2, (B,), 0, NUM_CLASSES)
    labels = jax.nn.one_hot(label_idx, NUM_CLASSES, dtype=jnp.float32)
    classes = jax.random.uniform(k3, (B, NUM_CLASSES), dtype=jnp.float32)
    reconstructions = jax.random.uniform(k4, (B, D), dtype=jnp.float32)

    # f32 inputs
    out = jax.block_until_ready(capsule_loss(images, labels, classes, reconstructions))
    ref = capsule_loss_ref(images, labels, classes, reconstructions)
    assert jnp.allclose(out, ref, rtol=1e-5, atol=1e-4), (out, ref)

    # native bf16 inputs for the big operands (in-kernel upcast path)
    images_bf = images.astype(jnp.bfloat16)
    recon_bf = reconstructions.astype(jnp.bfloat16)
    out_bf = jax.block_until_ready(capsule_loss(images_bf, labels, classes, recon_bf))
    ref_bf = capsule_loss_ref(images_bf, labels, classes, recon_bf)
    assert jnp.allclose(out_bf, ref_bf, rtol=1e-5, atol=1e-4), (out_bf, ref_bf)

    print("KERNEL_OK")
</pallas_src>

<mosaic_0001>
module attributes {stable_mosaic.version = 11 : i64} {
  func.func @_capsule_loss_kernel(%arg0: i32, %arg1: memref<2x10xf32, #tpu.memory_space<vmem>>, %arg2: memref<2x10xf32, #tpu.memory_space<vmem>>, %arg3: memref<2x1024xf32, #tpu.memory_space<vmem>>, %arg4: memref<2x1024xf32, #tpu.memory_space<vmem>>, %arg5: memref<1x1xf32, #tpu.memory_space<smem>>, %arg6: memref<1xf32, #tpu.memory_space<smem>>) attributes {dimension_semantics = [#tpu.dimension_semantics<arbitrary>], iteration_bounds = array<i64: 1>, scalar_prefetch = 0 : i64, scratch_operands = 1 : i64, tpu.core_type = #tpu.core_type<tc>, window_params = [{pipeline_mode = #tpu.pipeline_mode<synchronous>, transform_indices = @transform_0, window_bounds = array<i64: 2, 10>}, {pipeline_mode = #tpu.pipeline_mode<synchronous>, transform_indices = @transform_1, window_bounds = array<i64: 2, 10>}, {transform_indices = @transform_2, window_bounds = array<i64: 2, 1024>}, {transform_indices = @transform_3, window_bounds = array<i64: 2, 1024>}, {transform_indices = @transform_4, window_bounds = array<i64: 1, 1>}]} {
    %c0_i32 = arith.constant 0 : i32
    %0 = arith.cmpi eq, %arg0, %c0_i32 : i32
    %1 = arith.extui %0 : i1 to i32
    %c0_i32_0 = arith.constant 0 : i32
    %2 = arith.cmpi ne, %1, %c0_i32_0 : i32
    scf.if %2 {
      %c0_9 = arith.constant 0 : index
      %c0_10 = arith.constant 0 : index
      %18 = vector.load %arg1[%c0_9, %c0_10] : memref<2x10xf32, #tpu.memory_space<vmem>>, vector<2x10xf32>
      %c0_11 = arith.constant 0 : index
      %c0_12 = arith.constant 0 : index
      %19 = vector.load %arg2[%c0_11, %c0_12] : memref<2x10xf32, #tpu.memory_space<vmem>>, vector<2x10xf32>
      %cst_13 = arith.constant 0.899999976 : f32
      %20 = vector.broadcast %cst_13 : f32 to vector<2x10xf32>
      %21 = arith.subf %20, %19 : vector<2x10xf32>
      %cst_14 = arith.constant 0.000000e+00 : f32
      %22 = vector.broadcast %cst_14 : f32 to vector<2x10xf32>
      %23 = arith.maximumf %21, %22 : vector<2x10xf32>
      %cst_15 = arith.constant 1.000000e-01 : f32
      %24 = vector.broadcast %cst_15 : f32 to vector<2x10xf32>
      %25 = arith.subf %19, %24 : vector<2x10xf32>
      %cst_16 = arith.constant 0.000000e+00 : f32
      %26 = vector.broadcast %cst_16 : f32 to vector<2x10xf32>
      %27 = arith.maximumf %25, %26 : vector<2x10xf32>
      %28 = arith.mulf %23, %23 : vector<2x10xf32>
      %29 = arith.mulf %18, %28 : vector<2x10xf32>
      %cst_17 = arith.constant 1.000000e+00 : f32
      %30 = vector.broadcast %cst_17 : f32 to vector<2x10xf32>
      %31 = arith.subf %30, %18 : vector<2x10xf32>
      %cst_18 = arith.constant 5.000000e-01 : f32
      %32 = vector.broadcast %cst_18 : f32 to vector<2x10xf32>
      %33 = arith.mulf %32, %31 : vector<2x10xf32>
      %34 = arith.mulf %27, %27 : vector<2x10xf32>
      %35 = arith.mulf %33, %34 : vector<2x10xf32>
      %36 = arith.addf %29, %35 : vector<2x10xf32>
      %37 = vector.shape_cast %36 : vector<2x10xf32> to vector<1x2x10xf32>
      %cst_19 = arith.constant dense<0.000000e+00> : vector<1xf32>
      %38 = vector.multi_reduction <add>, %37, %cst_19 [1, 2] : vector<1x2x10xf32> to vector<1xf32>
      %39 = vector.shape_cast %38 : vector<1xf32> to vector<1x1x1xf32>
      %40 = vector.extract %39[0, 0, 0] : f32 from vector<1x1x1xf32>
      %c0_20 = arith.constant 0 : index
      %41 = memref.load %arg6[%c0_20] : memref<1xf32, #tpu.memory_space<smem>>
      memref.store %40, %arg6[%c0_20] : memref<1xf32, #tpu.memory_space<smem>>
    } else {
    }
    %c0 = arith.constant 0 : index
    %c0_1 = arith.constant 0 : index
    %3 = vector.load %arg4[%c0, %c0_1] : memref<2x1024xf32, #tpu.memory_space<vmem>>, vector<2x1024xf32>
    %c0_2 = arith.constant 0 : index
    %c0_3 = arith.constant 0 : index
    %4 = vector.load %arg3[%c0_2, %c0_3] : memref<2x1024xf32, #tpu.memory_space<vmem>>, vector<2x1024xf32>
    %5 = arith.subf %3, %4 : vector<2x1024xf32>
    %c0_4 = arith.constant 0 : index
    %6 = memref.load %arg6[%c0_4] : memref<1xf32, #tpu.memory_space<smem>>
    %7 = arith.mulf %5, %5 : vector<2x1024xf32>
    %8 = vector.shape_cast %7 : vector<2x1024xf32> to vector<1x2x1024xf32>
    %cst = arith.constant dense<0.000000e+00> : vector<1xf32>
    %9 = vector.multi_reduction <add>, %8, %cst [1, 2] : vector<1x2x1024xf32> to vector<1xf32>
    %10 = vector.shape_cast %9 : vector<1xf32> to vector<1x1x1xf32>
    %11 = vector.extract %10[0, 0, 0] : f32 from vector<1x1x1xf32>
    %cst_5 = arith.constant 5.000000e-04 : f32
    %12 = arith.mulf %cst_5, %11 : f32
    %13 = arith.addf %6, %12 : f32
    %c0_6 = arith.constant 0 : index
    %14 = memref.load %arg6[%c0_6] : memref<1xf32, #tpu.memory_space<smem>>
    memref.store %13, %arg6[%c0_6] : memref<1xf32, #tpu.memory_space<smem>>
    %c0_i32_7 = arith.constant 0 : i32
    %15 = arith.cmpi eq, %arg0, %c0_i32_7 : i32
    %16 = arith.extui %15 : i1 to i32
    %c0_i32_8 = arith.constant 0 : i32
    %17 = arith.cmpi ne, %16, %c0_i32_8 : i32
    scf.if %17 {
      %c0_9 = arith.constant 0 : index
      %18 = memref.load %arg6[%c0_9] : memref<1xf32, #tpu.memory_space<smem>>
      %cst_10 = arith.constant 5.000000e-01 : f32
      %19 = arith.mulf %18, %cst_10 : f32
      %c0_11 = arith.constant 0 : index
      %c0_12 = arith.constant 0 : index
      %20 = memref.load %arg5[%c0_11, %c0_12] : memref<1x1xf32, #tpu.memory_space<smem>>
      memref.store %19, %arg5[%c0_11, %c0_12] : memref<1x1xf32, #tpu.memory_space<smem>>
    } else {
    }
    return
  }
  func.func @transform_0(%arg0: i32) -> (i32, i32) {
    %c0_i32 = arith.constant 0 : i32
    %c0_i32_0 = arith.constant 0 : i32
    %c0_i32_1 = arith.constant 0 : i32
    return %c0_i32, %c0_i32_0 : i32, i32
  }
  func.func @transform_1(%arg0: i32) -> (i32, i32) {
    %c0_i32 = arith.constant 0 : i32
    %c0_i32_0 = arith.constant 0 : i32
    %c0_i32_1 = arith.constant 0 : i32
    return %c0_i32, %c0_i32_0 : i32, i32
  }
  func.func @transform_2(%arg0: i32) -> (i32, i32) {
    %c0_i32 = arith.constant 0 : i32
    %c0_i32_0 = arith.constant 0 : i32
    return %c0_i32, %arg0 : i32, i32
  }
  func.func @transform_3(%arg0: i32) -> (i32, i32) {
    %c0_i32 = arith.constant 0 : i32
    %c0_i32_0 = arith.constant 0 : i32
    return %c0_i32, %arg0 : i32, i32
  }
  func.func @transform_4(%arg0: i32) -> (i32, i32) {
    %c0_i32 = arith.constant 0 : i32
    %c0_i32_0 = arith.constant 0 : i32
    %c0_i32_1 = arith.constant 0 : i32
    return %c0_i32, %c0_i32_0 : i32, i32
  }
}

</mosaic_0001>

<llo_original>
// kernel: tpu_custom_call.1
$region0: #{tpu_custom_call.1}
  #allocation0 [shape = 'u32[]', space=smem, size = 0x4, offset = 0x4, fixed_abs, tag = 'smem constant byte address 0x4 - core index']
  #allocation1 [shape = 'u32[144,128]{1,0:T(1,128)}', space=vmem, size = 0x12000, scoped, tag = 'internal scratch']
  #allocation2 [shape = 'f32[1]{0:T(128)}', space=smem, size = 0x200, scoped, tag = 'scratch operand']
  %s0 = inlined_call_operand.hbm [shape: f32[2,10], index: 0, kind: input, shape index: {}]
  %s1 = inlined_call_operand.vmem [shape: f32[2,10], index: 1, kind: input, shape index: {}]
  %s2 = inlined_call_operand.hbm [shape: f32[2,1024], index: 2, kind: input, shape index: {}]
  %s3 = inlined_call_operand.hbm [shape: f32[2,1024], index: 3, kind: input, shape index: {}]
  %s4 = inlined_call_operand.hbm [shape: f32[1,1], index: 4, kind: output, shape index: {}]
  %s5 = sld [smem:[#allocation0]]
  $region46: #{tpu_custom_call.1} parent=0
    _
  %s7 = ssub.s32 1, %s5
  %s8 = scalar_select 0, %s7, %s5
  $region1: #{tpu_custom_call.1} parent=0
    #allocation3 [shape = 'u8[1024]{0}', space=vmem, size = 0x400, scoped, tag = 'input window, operand 0, single buffered']
    #allocation4 [shape = 's32[1]{0}', space=sflag, size = 0x4, scoped, tag = 'scoped memory for tpu_custom_call.1']
    #allocation5 [shape = 's32[1]{0}', space=sflag, size = 0x4, scoped, tag = 'scoped memory for tpu_custom_call.1']
    #allocation6 [shape = 'u8[8192]{0}', space=vmem, size = 0x2000, scoped, tag = 'input window, operand 2, single buffered']
    #allocation7 [shape = 's32[1]{0}', space=sflag, size = 0x4, scoped, tag = 'scoped memory for tpu_custom_call.1']
    #allocation8 [shape = 'u8[8192]{0}', space=vmem, size = 0x2000, scoped, tag = 'input window, operand 3, single buffered']
    #allocation9 [shape = 'u8[512]{0}', space=smem, size = 0x200, scoped, tag = 'output window, operand 0, single buffered']
    %9 = vsyncpa [#allocation4], 0
    %10 = vsyncpa [#allocation7], 0
    %11 = vsyncpa [#allocation5], 0
    // Predicated region
    $region2: #{tpu_custom_call.1} parent=1 // pred_check
      _
    $region3: #{tpu_custom_call.1} parent=1 // pred_check_branch
      %13 = sbr.rel (0) target = $region5
    $region4: #{tpu_custom_call.1} parent=1 // pred_region
      %s15 = ssub.s32 32, 32
      %16 = vsyncadd [#allocation4], %s15
      %s18 = sshll.u32 [#allocation3], 4
      %s19 = int_to_ptr.vmem [resolvable:$true] %s18
      %21 = dma.hbm_to_vmem [thread:$0]  %s0, 32, %s19, [#allocation4]
    $region5: #{tpu_custom_call.1} parent=1 // pred_fallthru
      _
    // Predicated region
    $region6: #{tpu_custom_call.1} parent=1 // pred_check
      _
    $region7: #{tpu_custom_call.1} parent=1 // pred_check_branch
      %23 = sbr.rel (0) target = $region9
    $region8: #{tpu_custom_call.1} parent=1 // pred_region
      _
    $region9: #{tpu_custom_call.1} parent=1 // pred_fallthru
      _
    // Predicated region
    $region10: #{tpu_custom_call.1} parent=1 // pred_check
      _
    $region11: #{tpu_custom_call.1} parent=1 // pred_check_branch
      %25 = sbr.rel (0) target = $region13
    $region12: #{tpu_custom_call.1} parent=1 // pred_region
      %s27 = ssub.s32 256, 256
      %28 = vsyncadd [#allocation7], %s27
      %s30 = sshll.u32 [#allocation6], 4
      %s31 = int_to_ptr.vmem [resolvable:$true] %s30
      %33 = dma.hbm_to_vmem [thread:$0]  %s2, 256, %s31, [#allocation7]
    $region13: #{tpu_custom_call.1} parent=1 // pred_fallthru
      _
    // Predicated region
    $region14: #{tpu_custom_call.1} parent=1 // pred_check
      _
    $region15: #{tpu_custom_call.1} parent=1 // pred_check_branch
      %35 = sbr.rel (0) target = $region17
    $region16: #{tpu_custom_call.1} parent=1 // pred_region
      %s37 = ssub.s32 256, 256
      %38 = vsyncadd [#allocation7], %s37
      %s40 = sshll.u32 [#allocation8], 4
      %s41 = int_to_ptr.vmem [resolvable:$true] %s40
      %43 = dma.hbm_to_vmem [thread:$0]  %s3, 256, %s41, [#allocation7]
    $region17: #{tpu_custom_call.1} parent=1 // pred_fallthru
      _
    // Predicated region
    $region18: #{tpu_custom_call.1} parent=1 // pred_check
      _
    $region19: #{tpu_custom_call.1} parent=1 // pred_check_branch
      %45 = sbr.rel (0) target = $region21
    $region20: #{tpu_custom_call.1} parent=1 // pred_region
      %46 = dma.done [#allocation4], 32
    $region21: #{tpu_custom_call.1} parent=1 // pred_fallthru
      _
    // Predicated region
    $region22: #{tpu_custom_call.1} parent=1 // pred_check
      _
    $region23: #{tpu_custom_call.1} parent=1 // pred_check_branch
      %48 = sbr.rel (0) target = $region25
    $region24: #{tpu_custom_call.1} parent=1 // pred_region
      %49 = dma.done [#allocation7], 256
    $region25: #{tpu_custom_call.1} parent=1 // pred_fallthru
      _
    // Predicated region
    $region26: #{tpu_custom_call.1} parent=1 // pred_check
      _
    $region27: #{tpu_custom_call.1} parent=1 // pred_check_branch
      %51 = sbr.rel (0) target = $region29
    $region28: #{tpu_custom_call.1} parent=1 // pred_region
      %52 = dma.done [#allocation7], 256
    $region29: #{tpu_custom_call.1} parent=1 // pred_fallthru
      _
    %p53 = scmp.eq.s32.totalorder 0, 0
    // Predicated region
    $region30: #{tpu_custom_call.1} parent=1 // pred_check
      %p54 = pneg %p53
    $region31: #{tpu_custom_call.1} parent=1 // pred_check_branch
      %56 = sbr.rel (%p54) target = $region33
    $region32: #{tpu_custom_call.1} parent=1 // pred_region
      %v57 = vld [vmem:[#allocation3] sm:$0x3]
      %v58 = vld [vmem:[%s1] sm:$0x3]
      %v59 = vsub.f32 0.9, %v58
      %v60 = vmax.f32 %v59, 0.0
      %v61 = vsub.f32 %v58, 0.1
      %v62 = vmax.f32 %v61, 0.0
      %v63 = vmul.f32 %v60, %v60
      %v64 = vmul.f32 %v57, %v63
      %v65 = vsub.f32 1.0, %v57
      %v66 = vmul.f32 %v65, 0.5
      %v67 = vmul.f32 %v62, %v62
      %v68 = vmul.f32 %v66, %v67
      %v69 = vadd.f32 %v64, %v68
      %vm70 = vcmask 74752
      %v71 = vsel %vm70, %v69, 0.0
      %72 = vadd.xlane.f32.xlu0 %v71
      %v73 = vpop.xlane.xlu0 %72
      %v74 = vrot.slane %v73, 4
      %v75 = vadd.f32 %v73, %v74
      %v76 = vrot.slane %v75, 2
      %v77 = vadd.f32 %v75, %v76
      %v78 = vrot.slane %v77, 1
      %v79 = vadd.f32 %v77, %v78
      %s80 = vtos %v79
      %s81 = scalar_lea.smem [#allocation2], 0
      %82 = sst [smem:[%s81]] %s80
    $region33: #{tpu_custom_call.1} parent=1 // pred_fallthru
      _
    %v83 = vld [vmem:[#allocation8] sm:$0xff]
    %v84 = vld [vmem:[#allocation8 + $0x8] sm:$0xff]
    %v85 = vld [vmem:[#allocation6] sm:$0xff]
    %v86 = vld [vmem:[#allocation6 + $0x8] sm:$0xff]
    %v87 = vsub.f32 %v83, %v85
    %v88 = vsub.f32 %v84, %v86
    %s89 = sld [smem:[#allocation2]]
    %v90 = vmul.f32 %v87, %v87
    %v91 = vmul.f32 %v88, %v88
    %v94 = vcombine.high %v90, %v90
    %v96 = vunpack.c.l.s4 1983009808
    %v97 = vunpack.c.0.s8 %v96
    %v98 = vlaneseq
    %v99 = vshrl.u32 %v98, 7
    %v100 = vsub.s32 %v97, %v99
    %v101 = vrot.slane %v90, %v100
    %v103 = vunpack.c.l.s4 1983009808
    %v104 = vunpack.c.0.s8 %v103
    %v105 = vlaneseq
    %v106 = vshrl.u32 %v105, 7
    %v107 = vsub.s32 %v104, %v106
    %v108 = vrot.slane %v94, %v107
    %v109 = vcombine.high %v101, %v101
    %v110 = vcombine.high %v108, %v108
    %v111 = vcombine.high %v91, %v91
    %v113 = vunpack.c.l.s4 1983009808
    %v114 = vunpack.c.0.s8 %v113
    %v115 = vlaneseq
    %v116 = vshrl.u32 %v115, 7
    %v117 = vsub.s32 %v114, %v116
    %v118 = vrot.slane %v91, %v117
    %v120 = vunpack.c.l.s4 1983009808
    %v121 = vunpack.c.0.s8 %v120
    %v122 = vlaneseq
    %v123 = vshrl.u32 %v122, 7
    %v124 = vsub.s32 %v121, %v123
    %v125 = vrot.slane %v111, %v124
    %v126 = vcombine.high %v118, %v118
    %v127 = vcombine.high %v125, %v125
    %vm136 = vcmask 1041408
    %v137 = vsel %vm136, %v101, 0.0
    %v138 = vsel %vm136, %v109, 0.0
    %v139 = vadd.f32 %v137, %v138
    %v140 = vsel %vm136, %v108, 0.0
    %v141 = vadd.f32 %v139, %v140
    %v142 = vsel %vm136, %v110, 0.0
    %v143 = vadd.f32 %v141, %v142
    %v144 = vsel %vm136, %v118, 0.0
    %v145 = vadd.f32 %v143, %v144
    %v146 = vsel %vm136, %v126, 0.0
    %v147 = vadd.f32 %v145, %v146
    %v148 = vsel %vm136, %v125, 0.0
    %v149 = vadd.f32 %v147, %v148
    %v150 = vsel %vm136, %v127, 0.0
    %v151 = vadd.f32 %v149, %v150
    %152 = vadd.xlane.f32.xlu0 %v151
    %v153 = vpop.xlane.xlu0 %152
    %v154 = vrot.slane %v153, 4
    %v155 = vadd.f32 %v153, %v154
    %v156 = vrot.slane %v155, 2
    %v157 = vadd.f32 %v155, %v156
    %v158 = vrot.slane %v157, 1
    %v159 = vadd.f32 %v157, %v158
    %s160 = vtos %v159
    %s161 = smul.f32 %s160, 0.0005
    %s162 = sadd.f32 %s89, %s161
    %s163 = scalar_lea.smem [#allocation2], 0
    %164 = sst [smem:[%s163]] %s162
    // Predicated region
    $region34: #{tpu_custom_call.1} parent=1 // pred_check
      %p165 = pneg %p53
    $region35: #{tpu_custom_call.1} parent=1 // pred_check_branch
      %167 = sbr.rel (%p165) target = $region37
    $region36: #{tpu_custom_call.1} parent=1 // pred_region
      %s168 = sld [smem:[#allocation2]]
      %s169 = smul.f32 %s168, 0.5
      %s170 = scalar_lea.smem [#allocation9], 0
      %171 = sst [smem:[%s170]] %s169
    $region37: #{tpu_custom_call.1} parent=1 // pred_fallthru
      _
    // Predicated region
    $region38: #{tpu_custom_call.1} parent=1 // pred_check
      _
    $region39: #{tpu_custom_call.1} parent=1 // pred_check_branch
      %173 = sbr.rel (0) target = $region41
    $region40: #{tpu_custom_call.1} parent=1 // pred_region
      %s175 = ssub.s32 16, 16
      %176 = vsyncadd [#allocation5], %s175
      %179 = dma.smem_to_hbm [#allocation9], 16, %s4, [#allocation5]
    $region41: #{tpu_custom_call.1} parent=1 // pred_fallthru
      _
    // Predicated region
    $region42: #{tpu_custom_call.1} parent=1 // pred_check
      _
    $region43: #{tpu_custom_call.1} parent=1 // pred_check_branch
      %181 = sbr.rel (0) target = $region45
    $region44: #{tpu_custom_call.1} parent=1 // pred_region
      %182 = dma.done [#allocation5], 16
    $region45: #{tpu_custom_call.1} parent=1 // pred_fallthru
      _
    %183 = sfence
    %184 = vsyncpa [#allocation4], 1
    %185 = vsyncpa [#allocation7], 1
    %186 = vsyncpa [#allocation5], 1

</llo_original>
